<compile_context>
chip_gen: v7x
topology: tpu7x:2x2x1
jax: 0.10.0
libtpu: 0.0.40
codegen_flags: <defaults>
</compile_context>

<pallas_src>
import jax
import jax.numpy as jnp
from jax.experimental import pallas as pl
from jax.experimental.pallas import tpu as pltpu


def tab_mlp_kernel(x_ref,
                   w1_ref, b1_ref, w2_ref, b2_ref, w3_ref, b3_ref,
                   w4_ref, b4_ref, w5_ref, b5_ref,
                   o_ref):
    # x_ref: (D_in, TB)  -- features on sublanes, batch on lanes.
    h = x_ref[...]

    def lin_relu(w_ref, b_ref, h):
        # (out, in) @ (in, TB) + (out, 1) -> (out, TB), f32 accumulation on MXU.
        y = jnp.dot(w_ref[...], h, preferred_element_type=jnp.float32) + b_ref[...]
        return jnp.maximum(y, 0.0)

    h = lin_relu(w1_ref, b1_ref, h)      # (10, TB)
    h = lin_relu(w2_ref, b2_ref, h)      # (50, TB)
    h = lin_relu(w3_ref, b3_ref, h)      # (10, TB)
    h = lin_relu(w4_ref, b4_ref, h)      # (5,  TB)
    logits = (jnp.dot(w5_ref[...], h, preferred_element_type=jnp.float32)
              + b5_ref[...])             # (out_dim, TB)

    # Numerically-stable softmax over the feature axis (axis 0 in this layout).
    m = jnp.max(logits, axis=0, keepdims=True)
    e = jnp.exp(logits - m)
    denom = jnp.sum(e, axis=0, keepdims=True)
    # Reciprocal goes to the EUP slot instead of a per-element VALU divide.
    o_ref[...] = (e * pl.reciprocal(denom, approx=False)).astype(o_ref.dtype)


def tab_model_forward(x, params, *, block_b=1024):
    """x: (B, input_dim) float32. params: w1..w5 in (out, in) layout, b1..b5 (out,)."""
    B, D_in = x.shape
    out_dim = params["w5"].shape[0]

    # Batch lives on the lane axis inside the kernel, so the tile must be a
    # multiple of 128 lanes.  Clamp the tile to what the padded batch actually
    # needs (tiny batches stay cheap; large batches get big, overhead-amortizing
    # tiles).
    min_pad = ((B + 127) // 128) * 128
    block_b = max(128, min(int(block_b), min_pad))
    block_b = ((block_b + 127) // 128) * 128
    B_pad = ((B + block_b - 1) // block_b) * block_b

    # Transposed, batch-on-lane input.  Padded columns are zeros -> finite
    # softmax output that is sliced off below.
    x_t = x.T
    if B_pad != B:
        x_t = jnp.pad(x_t, ((0, 0), (0, B_pad - B)))

    w = {k: params[k] for k in ("w1", "w2", "w3", "w4", "w5")}
    b = {k: params[k].reshape(-1, 1) for k in ("b1", "b2", "b3", "b4", "b5")}

    def full_spec(shape):
        # Whole (tiny) weight/bias array resident in VMEM; constant block index
        # means it is fetched once and reused across all grid steps.
        return pl.BlockSpec(shape, lambda i: (0, 0))

    grid = (B_pad // block_b,)

    # Advisory cost estimate so XLA schedules sensibly around the custom call.
    flops = 2 * B_pad * (D_in * 10 + 10 * 50 + 50 * 10 + 10 * 5 + 5 * out_dim)
    param_bytes = sum(int(v.size) * 4 for v in list(w.values()) + list(b.values()))
    bytes_accessed = B_pad * (D_in + out_dim) * 4 + param_bytes

    out_t = pl.pallas_call(
        tab_mlp_kernel,
        out_shape=jax.ShapeDtypeStruct((out_dim, B_pad), jnp.float32),
        grid_spec=pltpu.PrefetchScalarGridSpec(
            num_scalar_prefetch=0,
            grid=grid,
            in_specs=[
                pl.BlockSpec((D_in, block_b), lambda i: (0, i)),   # x tile
                full_spec(w["w1"].shape), full_spec(b["b1"].shape),
                full_spec(w["w2"].shape), full_spec(b["b2"].shape),
                full_spec(w["w3"].shape), full_spec(b["b3"].shape),
                full_spec(w["w4"].shape), full_spec(b["b4"].shape),
                full_spec(w["w5"].shape), full_spec(b["b5"].shape),
            ],
            out_specs=pl.BlockSpec((out_dim, block_b), lambda i: (0, i)),
        ),
        compiler_params=pltpu.CompilerParams(
            dimension_semantics=("parallel",),   # batch tiles are independent
        ),
        cost_estimate=pl.CostEstimate(
            flops=flops,
            transcendentals=B_pad * out_dim,
            bytes_accessed=bytes_accessed),
    )(x_t,
      w["w1"], b["b1"], w["w2"], b["b2"], w["w3"], b["b3"],
      w["w4"], b["b4"], w["w5"], b["b5"])

    return out_t[:, :B].T


def init_params(key, input_dim, output_dim):
    """Deterministic init mimicking torch.nn.Linear default (U(-1/sqrt(fan_in), +))."""
    dims = [(input_dim, 10), (10, 50), (50, 10), (10, 5), (5, output_dim)]
    params = {}
    for idx, (fan_in, fan_out) in enumerate(dims, start=1):
        key, kw, kb = jax.random.split(key, 3)
        bound = 1.0 / (fan_in ** 0.5)
        params[f"w{idx}"] = jax.random.uniform(
            kw, (fan_out, fan_in), jnp.float32, -bound, bound)
        params[f"b{idx}"] = jax.random.uniform(
            kb, (fan_out,), jnp.float32, -bound, bound)
    return params


def _reference_forward(x, params):
    h = x
    for idx in range(1, 5):
        h = jnp.maximum(h @ params[f"w{idx}"].T + params[f"b{idx}"], 0.0)
    logits = h @ params["w5"].T + params["b5"]
    return jax.nn.softmax(logits, axis=1)


if __name__ == "__main__":
    key = jax.random.PRNGKey(0)
    key, kx = jax.random.split(key)

    batch, input_dim, output_dim = 8, 16, 4
    x = jax.random.normal(kx, (batch, input_dim), jnp.float32)
    params = init_params(key, input_dim, output_dim)

    out = tab_model_forward(x, params)
    out = jax.block_until_ready(out)

    ref = _reference_forward(x, params)
    assert out.shape == (batch, output_dim)
    assert jnp.allclose(out, ref, atol=1e-5, rtol=1e-5), "mismatch vs reference"

    # Exercise the multi-tile grid + batch-padding path (grid = 3 steps).
    key, kx2 = jax.random.split(key)
    x2 = jax.random.normal(kx2, (300, input_dim), jnp.float32)
    out2 = jax.block_until_ready(tab_model_forward(x2, params, block_b=128))
    ref2 = _reference_forward(x2, params)
    assert out2.shape == (300, output_dim)
    assert jnp.allclose(out2, ref2, atol=1e-5, rtol=1e-5), "mismatch vs reference (tiled)"

    print("KERNEL_OK")
</pallas_src>

<mosaic_0001>
module attributes {stable_mosaic.version = 11 : i64} {
  func.func @tab_mlp_kernel(%arg0: i32, %arg1: memref<16x128xf32, #tpu.memory_space<vmem>>, %arg2: memref<10x16xf32, #tpu.memory_space<vmem>>, %arg3: memref<10x1xf32, #tpu.memory_space<vmem>>, %arg4: memref<50x10xf32, #tpu.memory_space<vmem>>, %arg5: memref<50x1xf32, #tpu.memory_space<vmem>>, %arg6: memref<10x50xf32, #tpu.memory_space<vmem>>, %arg7: memref<10x1xf32, #tpu.memory_space<vmem>>, %arg8: memref<5x10xf32, #tpu.memory_space<vmem>>, %arg9: memref<5x1xf32, #tpu.memory_space<vmem>>, %arg10: memref<4x5xf32, #tpu.memory_space<vmem>>, %arg11: memref<4x1xf32, #tpu.memory_space<vmem>>, %arg12: memref<4x128xf32, #tpu.memory_space<vmem>>) attributes {dimension_semantics = [#tpu.dimension_semantics<parallel>], iteration_bounds = array<i64: 1>, scalar_prefetch = 0 : i64, scratch_operands = 0 : i64, tpu.core_type = #tpu.core_type<tc>, window_params = [{transform_indices = @transform_0, window_bounds = array<i64: 16, 128>}, {pipeline_mode = #tpu.pipeline_mode<synchronous>, transform_indices = @transform_1, window_bounds = array<i64: 10, 16>}, {pipeline_mode = #tpu.pipeline_mode<synchronous>, transform_indices = @transform_2, window_bounds = array<i64: 10, 1>}, {pipeline_mode = #tpu.pipeline_mode<synchronous>, transform_indices = @transform_3, window_bounds = array<i64: 50, 10>}, {pipeline_mode = #tpu.pipeline_mode<synchronous>, transform_indices = @transform_4, window_bounds = array<i64: 50, 1>}, {pipeline_mode = #tpu.pipeline_mode<synchronous>, transform_indices = @transform_5, window_bounds = array<i64: 10, 50>}, {pipeline_mode = #tpu.pipeline_mode<synchronous>, transform_indices = @transform_6, window_bounds = array<i64: 10, 1>}, {pipeline_mode = #tpu.pipeline_mode<synchronous>, transform_indices = @transform_7, window_bounds = array<i64: 5, 10>}, {pipeline_mode = #tpu.pipeline_mode<synchronous>, transform_indices = @transform_8, window_bounds = array<i64: 5, 1>}, {pipeline_mode = #tpu.pipeline_mode<synchronous>, transform_indices = @transform_9, window_bounds = array<i64: 4, 5>}, {pipeline_mode = #tpu.pipeline_mode<synchronous>, transform_indices = @transform_10, window_bounds = array<i64: 4, 1>}, {transform_indices = @transform_11, window_bounds = array<i64: 4, 128>}]} {
    %c0 = arith.constant 0 : index
    %c0_0 = arith.constant 0 : index
    %0 = vector.load %arg1[%c0, %c0_0] : memref<16x128xf32, #tpu.memory_space<vmem>>, vector<16x128xf32>
    %c0_1 = arith.constant 0 : index
    %c0_2 = arith.constant 0 : index
    %1 = vector.load %arg2[%c0_1, %c0_2] : memref<10x16xf32, #tpu.memory_space<vmem>>, vector<10x16xf32>
    %cst = arith.constant dense<0.000000e+00> : vector<10x128xf32>
    %2 = tpu.matmul %1, %0, %cst {dimension_numbers = #tpu.dot_dimension_numbers<[1], [0], [0], [1], [0, 0, 1, 1], [], []>} : vector<10x16xf32>, vector<16x128xf32>, vector<10x128xf32> -> vector<10x128xf32>
    %c0_3 = arith.constant 0 : index
    %c0_4 = arith.constant 0 : index
    %3 = vector.load %arg3[%c0_3, %c0_4] : memref<10x1xf32, #tpu.memory_space<vmem>>, vector<10x1xf32>
    %4 = vector.broadcast %3 : vector<10x1xf32> to vector<10x128xf32>
    %5 = arith.addf %2, %4 : vector<10x128xf32>
    %cst_5 = arith.constant 0.000000e+00 : f32
    %6 = vector.broadcast %cst_5 : f32 to vector<10x128xf32>
    %7 = arith.maximumf %5, %6 : vector<10x128xf32>
    %c0_6 = arith.constant 0 : index
    %c0_7 = arith.constant 0 : index
    %8 = vector.load %arg4[%c0_6, %c0_7] : memref<50x10xf32, #tpu.memory_space<vmem>>, vector<50x10xf32>
    %cst_8 = arith.constant dense<0.000000e+00> : vector<50x128xf32>
    %9 = tpu.matmul %8, %7, %cst_8 {dimension_numbers = #tpu.dot_dimension_numbers<[1], [0], [0], [1], [0, 0, 1, 1], [], []>} : vector<50x10xf32>, vector<10x128xf32>, vector<50x128xf32> -> vector<50x128xf32>
    %c0_9 = arith.constant 0 : index
    %c0_10 = arith.constant 0 : index
    %10 = vector.load %arg5[%c0_9, %c0_10] : memref<50x1xf32, #tpu.memory_space<vmem>>, vector<50x1xf32>
    %11 = vector.broadcast %10 : vector<50x1xf32> to vector<50x128xf32>
    %12 = arith.addf %9, %11 : vector<50x128xf32>
    %cst_11 = arith.constant 0.000000e+00 : f32
    %13 = vector.broadcast %cst_11 : f32 to vector<50x128xf32>
    %14 = arith.maximumf %12, %13 : vector<50x128xf32>
    %c0_12 = arith.constant 0 : index
    %c0_13 = arith.constant 0 : index
    %15 = vector.load %arg6[%c0_12, %c0_13] : memref<10x50xf32, #tpu.memory_space<vmem>>, vector<10x50xf32>
    %cst_14 = arith.constant dense<0.000000e+00> : vector<10x128xf32>
    %16 = tpu.matmul %15, %14, %cst_14 {dimension_numbers = #tpu.dot_dimension_numbers<[1], [0], [0], [1], [0, 0, 1, 1], [], []>} : vector<10x50xf32>, vector<50x128xf32>, vector<10x128xf32> -> vector<10x128xf32>
    %c0_15 = arith.constant 0 : index
    %c0_16 = arith.constant 0 : index
    %17 = vector.load %arg7[%c0_15, %c0_16] : memref<10x1xf32, #tpu.memory_space<vmem>>, vector<10x1xf32>
    %18 = vector.broadcast %17 : vector<10x1xf32> to vector<10x128xf32>
    %19 = arith.addf %16, %18 : vector<10x128xf32>
    %cst_17 = arith.constant 0.000000e+00 : f32
    %20 = vector.broadcast %cst_17 : f32 to vector<10x128xf32>
    %21 = arith.maximumf %19, %20 : vector<10x128xf32>
    %c0_18 = arith.constant 0 : index
    %c0_19 = arith.constant 0 : index
    %22 = vector.load %arg8[%c0_18, %c0_19] : memref<5x10xf32, #tpu.memory_space<vmem>>, vector<5x10xf32>
    %cst_20 = arith.constant dense<0.000000e+00> : vector<5x128xf32>
    %23 = tpu.matmul %22, %21, %cst_20 {dimension_numbers = #tpu.dot_dimension_numbers<[1], [0], [0], [1], [0, 0, 1, 1], [], []>} : vector<5x10xf32>, vector<10x128xf32>, vector<5x128xf32> -> vector<5x128xf32>
    %c0_21 = arith.constant 0 : index
    %c0_22 = arith.constant 0 : index
    %24 = vector.load %arg9[%c0_21, %c0_22] : memref<5x1xf32, #tpu.memory_space<vmem>>, vector<5x1xf32>
    %25 = vector.broadcast %24 : vector<5x1xf32> to vector<5x128xf32>
    %26 = arith.addf %23, %25 : vector<5x128xf32>
    %cst_23 = arith.constant 0.000000e+00 : f32
    %27 = vector.broadcast %cst_23 : f32 to vector<5x128xf32>
    %28 = arith.maximumf %26, %27 : vector<5x128xf32>
    %c0_24 = arith.constant 0 : index
    %c0_25 = arith.constant 0 : index
    %29 = vector.load %arg10[%c0_24, %c0_25] : memref<4x5xf32, #tpu.memory_space<vmem>>, vector<4x5xf32>
    %cst_26 = arith.constant dense<0.000000e+00> : vector<4x128xf32>
    %30 = tpu.matmul %29, %28, %cst_26 {dimension_numbers = #tpu.dot_dimension_numbers<[1], [0], [0], [1], [0, 0, 1, 1], [], []>} : vector<4x5xf32>, vector<5x128xf32>, vector<4x128xf32> -> vector<4x128xf32>
    %c0_27 = arith.constant 0 : index
    %c0_28 = arith.constant 0 : index
    %31 = vector.load %arg11[%c0_27, %c0_28] : memref<4x1xf32, #tpu.memory_space<vmem>>, vector<4x1xf32>
    %32 = vector.broadcast %31 : vector<4x1xf32> to vector<4x128xf32>
    %33 = arith.addf %30, %32 : vector<4x128xf32>
    %cst_29 = arith.constant dense<0xFF800000> : vector<128xf32>
    %34 = vector.multi_reduction <maximumf>, %33, %cst_29 [0] : vector<4x128xf32> to vector<128xf32>
    %35 = vector.shape_cast %34 : vector<128xf32> to vector<1x128xf32>
    %36 = vector.broadcast %35 : vector<1x128xf32> to vector<4x128xf32>
    %37 = arith.subf %33, %36 : vector<4x128xf32>
    %38 = math.exp %37 : vector<4x128xf32>
    %cst_30 = arith.constant dense<0.000000e+00> : vector<128xf32>
    %39 = vector.multi_reduction <add>, %38, %cst_30 [0] : vector<4x128xf32> to vector<128xf32>
    %40 = vector.shape_cast %39 : vector<128xf32> to vector<1x128xf32>
    %41 = tpu.reciprocal %40 : vector<1x128xf32> -> vector<1x128xf32>
    %42 = vector.broadcast %41 : vector<1x128xf32> to vector<4x128xf32>
    %43 = arith.mulf %38, %42 : vector<4x128xf32>
    %c0_31 = arith.constant 0 : index
    %c0_32 = arith.constant 0 : index
    %44 = vector.load %arg12[%c0_31, %c0_32] : memref<4x128xf32, #tpu.memory_space<vmem>>, vector<4x128xf32>
    tpu.vector_store %arg12[%c0_31, %c0_32], %43 {strides = array<i32>} : memref<4x128xf32, #tpu.memory_space<vmem>>, vector<4x128xf32>,
    return
  }
  func.func @transform_0(%arg0: i32) -> (i32, i32) {
    %c0_i32 = arith.constant 0 : i32
    %c0_i32_0 = arith.constant 0 : i32
    return %c0_i32, %arg0 : i32, i32
  }
  func.func @transform_1(%arg0: i32) -> (i32, i32) {
    %c0_i32 = arith.constant 0 : i32
    %c0_i32_0 = arith.constant 0 : i32
    %c0_i32_1 = arith.constant 0 : i32
    return %c0_i32, %c0_i32_0 : i32, i32
  }
  func.func @transform_2(%arg0: i32) -> (i32, i32) {
    %c0_i32 = arith.constant 0 : i32
    %c0_i32_0 = arith.constant 0 : i32
    %c0_i32_1 = arith.constant 0 : i32
    return %c0_i32, %c0_i32_0 : i32, i32
  }
  func.func @transform_3(%arg0: i32) -> (i32, i32) {
    %c0_i32 = arith.constant 0 : i32
    %c0_i32_0 = arith.constant 0 : i32
    %c0_i32_1 = arith.constant 0 : i32
    return %c0_i32, %c0_i32_0 : i32, i32
  }
  func.func @transform_4(%arg0: i32) -> (i32, i32) {
    %c0_i32 = arith.constant 0 : i32
    %c0_i32_0 = arith.constant 0 : i32
    %c0_i32_1 = arith.constant 0 : i32
    return %c0_i32, %c0_i32_0 : i32, i32
  }
  func.func @transform_5(%arg0: i32) -> (i32, i32) {
    %c0_i32 = arith.constant 0 : i32
    %c0_i32_0 = arith.constant 0 : i32
    %c0_i32_1 = arith.constant 0 : i32
    return %c0_i32, %c0_i32_0 : i32, i32
  }
  func.func @transform_6(%arg0: i32) -> (i32, i32) {
    %c0_i32 = arith.constant 0 : i32
    %c0_i32_0 = arith.constant 0 : i32
    %c0_i32_1 = arith.constant 0 : i32
    return %c0_i32, %c0_i32_0 : i32, i32
  }
  func.func @transform_7(%arg0: i32) -> (i32, i32) {
    %c0_i32 = arith.constant 0 : i32
    %c0_i32_0 = arith.constant 0 : i32
    %c0_i32_1 = arith.constant 0 : i32
    return %c0_i32, %c0_i32_0 : i32, i32
  }
  func.func @transform_8(%arg0: i32) -> (i32, i32) {
    %c0_i32 = arith.constant 0 : i32
    %c0_i32_0 = arith.constant 0 : i32
    %c0_i32_1 = arith.constant 0 : i32
    return %c0_i32, %c0_i32_0 : i32, i32
  }
  func.func @transform_9(%arg0: i32) -> (i32, i32) {
    %c0_i32 = arith.constant 0 : i32
    %c0_i32_0 = arith.constant 0 : i32
    %c0_i32_1 = arith.constant 0 : i32
    return %c0_i32, %c0_i32_0 : i32, i32
  }
  func.func @transform_10(%arg0: i32) -> (i32, i32) {
    %c0_i32 = arith.constant 0 : i32
    %c0_i32_0 = arith.constant 0 : i32
    %c0_i32_1 = arith.constant 0 : i32
    return %c0_i32, %c0_i32_0 : i32, i32
  }
  func.func @transform_11(%arg0: i32) -> (i32, i32) {
    %c0_i32 = arith.constant 0 : i32
    %c0_i32_0 = arith.constant 0 : i32
    return %c0_i32, %arg0 : i32, i32
  }
}

</mosaic_0001>

<llo_original>
// kernel: tpu_custom_call.1
$region0: #{tpu_custom_call.1}
  #allocation0 [shape = 'u32[]', space=smem, size = 0x4, offset = 0x4, fixed_abs, tag = 'smem constant byte address 0x4 - core index']
  #allocation1 [shape = 'u32[144,128]{1,0:T(1,128)}', space=vmem, size = 0x12000, scoped, tag = 'internal scratch']
  %s0 = inlined_call_operand.vmem [shape: f32[16,128], index: 0, kind: input, shape index: {}]
  %s1 = inlined_call_operand.vmem [shape: f32[10,16], index: 1, kind: input, shape index: {}]
  %s2 = inlined_call_operand.vmem [shape: f32[10,1], index: 2, kind: input, shape index: {}]
  %s3 = inlined_call_operand.vmem [shape: f32[50,10], index: 3, kind: input, shape index: {}]
  %s4 = inlined_call_operand.vmem [shape: f32[50,1], index: 4, kind: input, shape index: {}]
  %s5 = inlined_call_operand.vmem [shape: f32[10,50], index: 5, kind: input, shape index: {}]
  %s6 = inlined_call_operand.vmem [shape: f32[10,1], index: 6, kind: input, shape index: {}]
  %s7 = inlined_call_operand.vmem [shape: f32[5,10], index: 7, kind: input, shape index: {}]
  %s8 = inlined_call_operand.vmem [shape: f32[5,1], index: 8, kind: input, shape index: {}]
  %s9 = inlined_call_operand.vmem [shape: f32[4,5], index: 9, kind: input, shape index: {}]
  %s10 = inlined_call_operand.vmem [shape: f32[4,1], index: 10, kind: input, shape index: {}]
  %s11 = inlined_call_operand.hbm [shape: f32[4,128], index: 11, kind: output, shape index: {}]
  %s12 = sld [smem:[#allocation0]]
  $region54: #{tpu_custom_call.1} parent=0
    _
  %s14 = ssub.s32 1, %s12
  %s15 = scalar_select 0, %s14, %s12
  $region1: #{tpu_custom_call.1} parent=0
    #allocation2 [shape = 'u8[2048]{0}', space=vmem, size = 0x800, scoped, tag = 'output window, operand 0, single buffered']
    #allocation3 [shape = 's32[1]{0}', space=sflag, size = 0x4, scoped, tag = 'scoped memory for tpu_custom_call.1']
    %16 = vsyncpa [#allocation3], 0
    // Predicated region
    $region2: #{tpu_custom_call.1} parent=1 // pred_check
      _
    $region3: #{tpu_custom_call.1} parent=1 // pred_check_branch
      %18 = sbr.rel (0) target = $region5
    $region4: #{tpu_custom_call.1} parent=1 // pred_region
      _
    $region5: #{tpu_custom_call.1} parent=1 // pred_fallthru
      _
    // Predicated region
    $region6: #{tpu_custom_call.1} parent=1 // pred_check
      _
    $region7: #{tpu_custom_call.1} parent=1 // pred_check_branch
      %20 = sbr.rel (0) target = $region9
    $region8: #{tpu_custom_call.1} parent=1 // pred_region
      _
    $region9: #{tpu_custom_call.1} parent=1 // pred_fallthru
      _
    // Predicated region
    $region10: #{tpu_custom_call.1} parent=1 // pred_check
      _
    $region11: #{tpu_custom_call.1} parent=1 // pred_check_branch
      %22 = sbr.rel (0) target = $region13
    $region12: #{tpu_custom_call.1} parent=1 // pred_region
      _
    $region13: #{tpu_custom_call.1} parent=1 // pred_fallthru
      _
    // Predicated region
    $region14: #{tpu_custom_call.1} parent=1 // pred_check
      _
    $region15: #{tpu_custom_call.1} parent=1 // pred_check_branch
      %24 = sbr.rel (0) target = $region17
    $region16: #{tpu_custom_call.1} parent=1 // pred_region
      _
    $region17: #{tpu_custom_call.1} parent=1 // pred_fallthru
      _
    // Predicated region
    $region18: #{tpu_custom_call.1} parent=1 // pred_check
      _
    $region19: #{tpu_custom_call.1} parent=1 // pred_check_branch
      %26 = sbr.rel (0) target = $region21
    $region20: #{tpu_custom_call.1} parent=1 // pred_region
      _
    $region21: #{tpu_custom_call.1} parent=1 // pred_fallthru
      _
    // Predicated region
    $region22: #{tpu_custom_call.1} parent=1 // pred_check
      _
    $region23: #{tpu_custom_call.1} parent=1 // pred_check_branch
      %28 = sbr.rel (0) target = $region25
    $region24: #{tpu_custom_call.1} parent=1 // pred_region
      _
    $region25: #{tpu_custom_call.1} parent=1 // pred_fallthru
      _
    // Predicated region
    $region26: #{tpu_custom_call.1} parent=1 // pred_check
      _
    $region27: #{tpu_custom_call.1} parent=1 // pred_check_branch
      %30 = sbr.rel (0) target = $region29
    $region28: #{tpu_custom_call.1} parent=1 // pred_region
      _
    $region29: #{tpu_custom_call.1} parent=1 // pred_fallthru
      _
    // Predicated region
    $region30: #{tpu_custom_call.1} parent=1 // pred_check
      _
    $region31: #{tpu_custom_call.1} parent=1 // pred_check_branch
      %32 = sbr.rel (0) target = $region33
    $region32: #{tpu_custom_call.1} parent=1 // pred_region
      _
    $region33: #{tpu_custom_call.1} parent=1 // pred_fallthru
      _
    // Predicated region
    $region34: #{tpu_custom_call.1} parent=1 // pred_check
      _
    $region35: #{tpu_custom_call.1} parent=1 // pred_check_branch
      %34 = sbr.rel (0) target = $region37
    $region36: #{tpu_custom_call.1} parent=1 // pred_region
      _
    $region37: #{tpu_custom_call.1} parent=1 // pred_fallthru
      _
    // Predicated region
    $region38: #{tpu_custom_call.1} parent=1 // pred_check
      _
    $region39: #{tpu_custom_call.1} parent=1 // pred_check_branch
      %36 = sbr.rel (0) target = $region41
    $region40: #{tpu_custom_call.1} parent=1 // pred_region
      _
    $region41: #{tpu_custom_call.1} parent=1 // pred_fallthru
      _
    // Predicated region
    $region42: #{tpu_custom_call.1} parent=1 // pred_check
      _
    $region43: #{tpu_custom_call.1} parent=1 // pred_check_branch
      %38 = sbr.rel (0) target = $region45
    $region44: #{tpu_custom_call.1} parent=1 // pred_region
      _
    $region45: #{tpu_custom_call.1} parent=1 // pred_fallthru
      _
    %v39 = vld [vmem:[%s0] sm:$0xff]
    %v40 = vld [vmem:[%s0 + $0x8] sm:$0xff]
    %v41 = vld [vmem:[%s1] sm:$0xff]
    %v42 = vld [vmem:[%s1 + $0x8] sm:$0x3]
    %v43 = vld [vmem:[%s2] sm:$0xff]
    %v44 = vld [vmem:[%s2 + $0x8] sm:$0x3]
    %46 = vset.pattern.permute.xlu0 0
    %47 = vperm.xlu0 %46, %v43
    %v48 = vpop.permute.xlu0 %47
    %51 = vset.pattern.permute.xlu0 0
    %52 = vperm.xlu0 %51, %v44
    %v53 = vpop.permute.xlu0 %52
    %vm55 = vcmask 130048
    %v57 = vsel %vm55, %v41, 0
    %v60 = vsel %vm55, %v42, 0
    %62 = vmatprep.subr.mxu0 0.0
    %63 = vmatpush1.msra.mxu0 %v39
    %64 = vmatprep.subr.mxu0 0.0
    %65 = vmatpush1.msra.mxu0 %v40
    %66 = vmatprep.subr.mxu0 0.0
    %67 = vmatpush1.msra.mxu0 0.0
    %68 = vmatprep.subr.mxu0 0.0
    %69 = vmatpush1.msra.mxu0 0.0
    %70 = vmatprep.subr.mxu0 0.0
    %71 = vmatpush1.msra.mxu0 0.0
    %72 = vmatprep.subr.mxu0 0.0
    %73 = vmatpush1.msra.mxu0 0.0
    %74 = vmatprep.subr.mxu0 0.0
    %75 = vmatpush1.msra.mxu0 0.0
    %76 = vmatprep.subr.mxu0 0.0
    %77 = vmatpush1.msra.mxu0 0.0
    %78 = vmatprep.subr.mxu0 0.0
    %79 = vmatpush1.msra.mxu0 0.0
    %80 = vmatprep.subr.mxu0 0.0
    %81 = vmatpush1.msra.mxu0 0.0
    %82 = vmatprep.subr.mxu0 0.0
    %83 = vmatpush1.msra.mxu0 0.0
    %84 = vmatprep.subr.mxu0 0.0
    %85 = vmatpush1.msra.mxu0 0.0
    %86 = vmatprep.subr.mxu0 0.0
    %87 = vmatpush1.msra.mxu0 0.0
    %88 = vmatprep.subr.mxu0 0.0
    %89 = vmatpush1.msra.mxu0 0.0
    %90 = vmatprep.subr.mxu0 0.0
    %91 = vmatpush1.msra.mxu0 0.0
    %92 = vmatprep.subr.mxu0 0.0
    %93 = vmatpush1.msra.mxu0 0.0
    %94 = vmatprep.subr.mxu0 0.0
    %95 = vmatpush1.msra.mxu0 0.0
    %96 = vmatprep.subr.mxu0 0.0
    %97 = vmatpush1.msra.mxu0 0.0
    %98 = vmatprep.subr.mxu0 0.0
    %99 = vmatpush1.msra.mxu0 0.0
    %100 = vmatprep.subr.mxu0 0.0
    %101 = vmatpush1.msra.mxu0 0.0
    %102 = vmatprep.subr.mxu0 0.0
    %103 = vmatpush1.msra.mxu0 0.0
    %104 = vmatprep.subr.mxu0 0.0
    %105 = vmatpush1.msra.mxu0 0.0
    %106 = vmatprep.subr.mxu0 0.0
    %107 = vmatpush1.msra.mxu0 0.0
    %108 = vmatprep.subr.mxu0 0.0
    %109 = vmatpush1.msra.mxu0 0.0
    %110 = vmatprep.subr.mxu0 0.0
    %111 = vmatpush1.msra.mxu0 0.0
    %112 = vmatprep.subr.mxu0 0.0
    %113 = vmatpush1.msra.mxu0 0.0
    %114 = vmatprep.subr.mxu0 0.0
    %115 = vmatpush1.msra.mxu0 0.0
    %116 = vmatprep.subr.mxu0 0.0
    %117 = vmatpush1.msra.mxu0 0.0
    %118 = vmatprep.subr.mxu0 0.0
    %119 = vmatpush1.msra.mxu0 0.0
    %120 = vmatprep.subr.mxu0 0.0
    %121 = vmatpush1.msra.mxu0 0.0
    %122 = vmatprep.subr.mxu0 0.0
    %123 = vmatpush1.msra.mxu0 0.0
    %124 = vmatprep.subr.mxu0 0.0
    %125 = vmatpush1.msra.mxu0 0.0
    %126 = vmatprep.mubr.f32.mxu0 0.0
    %127 = vmatmul.mubr.f32.gmra.mrb[0].mxu0 %v57
    %v128 = vpop.f32.mrb[0].mxu0
    %v129 = vadd.f32 %v48, %v128
    %v130 = vpop.f32.mrb[0].mxu0
    %131 = vmatprep.mubr.f32.mxu0 0.0
    %132 = vmatmul.mubr.f32.gmra.mrb[0].mxu0 %v60
    %v133 = vpop.f32.mrb[0].mxu0
    %v134 = vadd.f32 %v53, %v133
    %v135 = vpop.f32.mrb[0].mxu0
    %136 = vdwg.mxu0
    %v137 = vmax.f32 %v129, 0.0
    %v138 = vmax.f32 %v134, 0.0
    %v139 = vld [vmem:[%s3] sm:$0xff]
    %v140 = vld [vmem:[%s3 + $0x8] sm:$0xff]
    %v141 = vld [vmem:[%s3 + $0x10] sm:$0xff]
    %v142 = vld [vmem:[%s3 + $0x18] sm:$0xff]
    %v143 = vld [vmem:[%s3 + $0x20] sm:$0xff]
    %v144 = vld [vmem:[%s3 + $0x28] sm:$0xff]
    %v145 = vld [vmem:[%s3 + $0x30] sm:$0x3]
    %v146 = vld [vmem:[%s4] sm:$0xff]
    %v147 = vld [vmem:[%s4 + $0x8] sm:$0xff]
    %v148 = vld [vmem:[%s4 + $0x10] sm:$0xff]
    %v149 = vld [vmem:[%s4 + $0x18] sm:$0xff]
    %v150 = vld [vmem:[%s4 + $0x20] sm:$0xff]
    %v151 = vld [vmem:[%s4 + $0x28] sm:$0xff]
    %v152 = vld [vmem:[%s4 + $0x30] sm:$0x3]
    %154 = vset.pattern.permute.xlu0 0
    %155 = vperm.xlu0 %154, %v146
    %v156 = vpop.permute.xlu0 %155
    %159 = vset.pattern.permute.xlu0 0
    %160 = vperm.xlu0 %159, %v147
    %v161 = vpop.permute.xlu0 %160
    %164 = vset.pattern.permute.xlu0 0
    %165 = vperm.xlu0 %164, %v148
    %v166 = vpop.permute.xlu0 %165
    %169 = vset.pattern.permute.xlu0 0
    %170 = vperm.xlu0 %169, %v149
    %v171 = vpop.permute.xlu0 %170
    %174 = vset.pattern.permute.xlu0 0
    %175 = vperm.xlu0 %174, %v150
    %v176 = vpop.permute.xlu0 %175
    %179 = vset.pattern.permute.xlu0 0
    %180 = vperm.xlu0 %179, %v151
    %v181 = vpop.permute.xlu0 %180
    %184 = vset.pattern.permute.xlu0 0
    %185 = vperm.xlu0 %184, %v152
    %v186 = vpop.permute.xlu0 %185
    %vm188 = vcmask 80896
    %v190 = vsel %vm188, %v139, 0
    %v193 = vsel %vm188, %v140, 0
    %v196 = vsel %vm188, %v141, 0
    %v199 = vsel %vm188, %v142, 0
    %v202 = vsel %vm188, %v143, 0
    %v205 = vsel %vm188, %v144, 0
    %v208 = vsel %vm188, %v145, 0
    %vm210 = vcmask 1041408
    %v212 = vsel %vm210, %v138, 0
    %214 = vmatprep.subr.mxu0 0.0
    %215 = vmatpush1.msra.mxu0 %v137
    %216 = vmatprep.subr.mxu0 0.0
    %217 = vmatpush1.msra.mxu0 %v212
    %218 = vmatprep.subr.mxu0 0.0
    %219 = vmatpush1.msra.mxu0 0.0
    %220 = vmatprep.subr.mxu0 0.0
    %221 = vmatpush1.msra.mxu0 0.0
    %222 = vmatprep.subr.mxu0 0.0
    %223 = vmatpush1.msra.mxu0 0.0
    %224 = vmatprep.subr.mxu0 0.0
    %225 = vmatpush1.msra.mxu0 0.0
    %226 = vmatprep.subr.mxu0 0.0
    %227 = vmatpush1.msra.mxu0 0.0
    %228 = vmatprep.subr.mxu0 0.0
    %229 = vmatpush1.msra.mxu0 0.0
    %230 = vmatprep.subr.mxu0 0.0
    %231 = vmatpush1.msra.mxu0 0.0
    %232 = vmatprep.subr.mxu0 0.0
    %233 = vmatpush1.msra.mxu0 0.0
    %234 = vmatprep.subr.mxu0 0.0
    %235 = vmatpush1.msra.mxu0 0.0
    %236 = vmatprep.subr.mxu0 0.0
    %237 = vmatpush1.msra.mxu0 0.0
    %238 = vmatprep.subr.mxu0 0.0
    %239 = vmatpush1.msra.mxu0 0.0
    %240 = vmatprep.subr.mxu0 0.0
    %241 = vmatpush1.msra.mxu0 0.0
    %242 = vmatprep.subr.mxu0 0.0
    %243 = vmatpush1.msra.mxu0 0.0
    %244 = vmatprep.subr.mxu0 0.0
    %245 = vmatpush1.msra.mxu0 0.0
    %246 = vmatprep.subr.mxu0 0.0
    %247 = vmatpush1.msra.mxu0 0.0
    %248 = vmatprep.subr.mxu0 0.0
    %249 = vmatpush1.msra.mxu0 0.0
    %250 = vmatprep.subr.mxu0 0.0
    %251 = vmatpush1.msra.mxu0 0.0
    %252 = vmatprep.subr.mxu0 0.0
    %253 = vmatpush1.msra.mxu0 0.0
    %254 = vmatprep.subr.mxu0 0.0
    %255 = vmatpush1.msra.mxu0 0.0
    %256 = vmatprep.subr.mxu0 0.0
    %257 = vmatpush1.msra.mxu0 0.0
    %258 = vmatprep.subr.mxu0 0.0
    %259 = vmatpush1.msra.mxu0 0.0
    %260 = vmatprep.subr.mxu0 0.0
    %261 = vmatpush1.msra.mxu0 0.0
    %262 = vmatprep.subr.mxu0 0.0
    %263 = vmatpush1.msra.mxu0 0.0
    %264 = vmatprep.subr.mxu0 0.0
    %265 = vmatpush1.msra.mxu0 0.0
    %266 = vmatprep.subr.mxu0 0.0
    %267 = vmatpush1.msra.mxu0 0.0
    %268 = vmatprep.subr.mxu0 0.0
    %269 = vmatpush1.msra.mxu0 0.0
    %270 = vmatprep.subr.mxu0 0.0
    %271 = vmatpush1.msra.mxu0 0.0
    %272 = vmatprep.subr.mxu0 0.0
    %273 = vmatpush1.msra.mxu0 0.0
    %274 = vmatprep.subr.mxu0 0.0
    %275 = vmatpush1.msra.mxu0 0.0
    %276 = vmatprep.subr.mxu0 0.0
    %277 = vmatpush1.msra.mxu0 0.0
    %278 = vmatprep.mubr.f32.mxu0 0.0
    %279 = vmatmul.mubr.f32.gmra.mrb[0].mxu0 %v190
    %v280 = vpop.f32.mrb[0].mxu0
    %v281 = vadd.f32 %v156, %v280
    %v282 = vpop.f32.mrb[0].mxu0
    %283 = vmatprep.mubr.f32.mxu0 0.0
    %284 = vmatmul.mubr.f32.gmra.mrb[0].mxu0 %v193
    %v285 = vpop.f32.mrb[0].mxu0
    %v286 = vadd.f32 %v161, %v285
    %v287 = vpop.f32.mrb[0].mxu0
    %288 = vmatprep.mubr.f32.mxu0 0.0
    %289 = vmatmul.mubr.f32.gmra.mrb[0].mxu0 %v196
    %v290 = vpop.f32.mrb[0].mxu0
    %v291 = vadd.f32 %v166, %v290
    %v292 = vpop.f32.mrb[0].mxu0
    %293 = vmatprep.mubr.f32.mxu0 0.0
    %294 = vmatmul.mubr.f32.gmra.mrb[0].mxu0 %v199
    %v295 = vpop.f32.mrb[0].mxu0
    %v296 = vadd.f32 %v171, %v295
    %v297 = vpop.f32.mrb[0].mxu0
    %298 = vmatprep.mubr.f32.mxu0 0.0
    %299 = vmatmul.mubr.f32.gmra.mrb[0].mxu0 %v202
    %v300 = vpop.f32.mrb[0].mxu0
    %v301 = vadd.f32 %v176, %v300
    %v302 = vpop.f32.mrb[0].mxu0
    %303 = vmatprep.mubr.f32.mxu0 0.0
    %304 = vmatmul.mubr.f32.gmra.mrb[0].mxu0 %v205
    %v305 = vpop.f32.mrb[0].mxu0
    %v306 = vadd.f32 %v181, %v305
    %v307 = vpop.f32.mrb[0].mxu0
    %308 = vmatprep.mubr.f32.mxu0 0.0
    %309 = vmatmul.mubr.f32.gmra.mrb[0].mxu0 %v208
    %v310 = vpop.f32.mrb[0].mxu0
    %v311 = vadd.f32 %v186, %v310
    %v312 = vpop.f32.mrb[0].mxu0
    %313 = vdwg.mxu0
    %v314 = vmax.f32 %v281, 0.0
    %v315 = vmax.f32 %v286, 0.0
    %v316 = vmax.f32 %v291, 0.0
    %v317 = vmax.f32 %v296, 0.0
    %v318 = vmax.f32 %v301, 0.0
    %v319 = vmax.f32 %v306, 0.0
    %v320 = vmax.f32 %v311, 0.0
    %v321 = vld [vmem:[%s5] sm:$0xff]
    %v322 = vld [vmem:[%s5 + $0x8] sm:$0x3]
    %v323 = vld [vmem:[%s6] sm:$0xff]
    %v324 = vld [vmem:[%s6 + $0x8] sm:$0x3]
    %326 = vset.pattern.permute.xlu0 0
    %327 = vperm.xlu0 %326, %v323
    %v328 = vpop.permute.xlu0 %327
    %331 = vset.pattern.permute.xlu0 0
    %332 = vperm.xlu0 %331, %v324
    %v333 = vpop.permute.xlu0 %332
    %vm335 = vcmask 408576
    %v337 = vsel %vm335, %v321, 0
    %v340 = vsel %vm335, %v322, 0
    %v343 = vsel %vm210, %v320, 0
    %345 = vmatprep.subr.mxu0 0.0
    %346 = vmatpush1.msra.mxu0 %v314
    %347 = vmatprep.subr.mxu0 0.0
    %348 = vmatpush1.msra.mxu0 %v315
    %349 = vmatprep.subr.mxu0 0.0
    %350 = vmatpush1.msra.mxu0 %v316
    %351 = vmatprep.subr.mxu0 0.0
    %352 = vmatpush1.msra.mxu0 %v317
    %353 = vmatprep.subr.mxu0 0.0
    %354 = vmatpush1.msra.mxu0 %v318
    %355 = vmatprep.subr.mxu0 0.0
    %356 = vmatpush1.msra.mxu0 %v319
    %357 = vmatprep.subr.mxu0 0.0
    %358 = vmatpush1.msra.mxu0 %v343
    %359 = vmatprep.subr.mxu0 0.0
    %360 = vmatpush1.msra.mxu0 0.0
    %361 = vmatprep.subr.mxu0 0.0
    %362 = vmatpush1.msra.mxu0 0.0
    %363 = vmatprep.subr.mxu0 0.0
    %364 = vmatpush1.msra.mxu0 0.0
    %365 = vmatprep.subr.mxu0 0.0
    %366 = vmatpush1.msra.mxu0 0.0
    %367 = vmatprep.subr.mxu0 0.0
    %368 = vmatpush1.msra.mxu0 0.0
    %369 = vmatprep.subr.mxu0 0.0
    %370 = vmatpush1.msra.mxu0 0.0
    %371 = vmatprep.subr.mxu0 0.0
    %372 = vmatpush1.msra.mxu0 0.0
    %373 = vmatprep.subr.mxu0 0.0
    %374 = vmatpush1.msra.mxu0 0.0
    %375 = vmatprep.subr.mxu0 0.0
    %376 = vmatpush1.msra.mxu0 0.0
    %377 = vmatprep.subr.mxu0 0.0
    %378 = vmatpush1.msra.mxu0 0.0
    %379 = vmatprep.subr.mxu0 0.0
    %380 = vmatpush1.msra.mxu0 0.0
    %381 = vmatprep.subr.mxu0 0.0
    %382 = vmatpush1.msra.mxu0 0.0
    %383 = vmatprep.subr.mxu0 0.0
    %384 = vmatpush1.msra.mxu0 0.0
    %385 = vmatprep.subr.mxu0 0.0
    %386 = vmatpush1.msra.mxu0 0.0
    %387 = vmatprep.subr.mxu0 0.0
    %388 = vmatpush1.msra.mxu0 0.0
    %389 = vmatprep.subr.mxu0 0.0
    %390 = vmatpush1.msra.mxu0 0.0
    %391 = vmatprep.subr.mxu0 0.0
    %392 = vmatpush1.msra.mxu0 0.0
    %393 = vmatprep.subr.mxu0 0.0
    %394 = vmatpush1.msra.mxu0 0.0
    %395 = vmatprep.subr.mxu0 0.0
    %396 = vmatpush1.msra.mxu0 0.0
    %397 = vmatprep.subr.mxu0 0.0
    %398 = vmatpush1.msra.mxu0 0.0
    %399 = vmatprep.subr.mxu0 0.0
    %400 = vmatpush1.msra.mxu0 0.0
    %401 = vmatprep.subr.mxu0 0.0
    %402 = vmatpush1.msra.mxu0 0.0
    %403 = vmatprep.subr.mxu0 0.0
    %404 = vmatpush1.msra.mxu0 0.0
    %405 = vmatprep.subr.mxu0 0.0
    %406 = vmatpush1.msra.mxu0 0.0
    %407 = vmatprep.subr.mxu0 0.0
    %408 = vmatpush1.msra.mxu0 0.0
    %409 = vmatprep.mubr.f32.mxu0 0.0
    %410 = vmatmul.mubr.f32.gmra.mrb[0].mxu0 %v337
    %v411 = vpop.f32.mrb[0].mxu0
    %v412 = vadd.f32 %v328, %v411
    %v413 = vpop.f32.mrb[0].mxu0
    %414 = vmatprep.mubr.f32.mxu0 0.0
    %415 = vmatmul.mubr.f32.gmra.mrb[0].mxu0 %v340
    %v416 = vpop.f32.mrb[0].mxu0
    %v417 = vadd.f32 %v333, %v416
    %v418 = vpop.f32.mrb[0].mxu0
    %419 = vdwg.mxu0
    %v420 = vmax.f32 %v412, 0.0
    %v421 = vmax.f32 %v417, 0.0
    %v422 = vld [vmem:[%s7] sm:$0x1f]
    %v423 = vld [vmem:[%s8] sm:$0x1f]
    %425 = vset.pattern.permute.xlu0 0
    %426 = vperm.xlu0 %425, %v423
    %v427 = vpop.permute.xlu0 %426
    %v430 = vsel %vm188, %v422, 0
    %v433 = vsel %vm210, %v421, 0
    %435 = vmatprep.subr.mxu0 0.0
    %436 = vmatpush1.msra.mxu0 %v420
    %437 = vmatprep.subr.mxu0 0.0
    %438 = vmatpush1.msra.mxu0 %v433
    %439 = vmatprep.subr.mxu0 0.0
    %440 = vmatpush1.msra.mxu0 0.0
    %441 = vmatprep.subr.mxu0 0.0
    %442 = vmatpush1.msra.mxu0 0.0
    %443 = vmatprep.subr.mxu0 0.0
    %444 = vmatpush1.msra.mxu0 0.0
    %445 = vmatprep.subr.mxu0 0.0
    %446 = vmatpush1.msra.mxu0 0.0
    %447 = vmatprep.subr.mxu0 0.0
    %448 = vmatpush1.msra.mxu0 0.0
    %449 = vmatprep.subr.mxu0 0.0
    %450 = vmatpush1.msra.mxu0 0.0
    %451 = vmatprep.subr.mxu0 0.0
    %452 = vmatpush1.msra.mxu0 0.0
    %453 = vmatprep.subr.mxu0 0.0
    %454 = vmatpush1.msra.mxu0 0.0
    %455 = vmatprep.subr.mxu0 0.0
    %456 = vmatpush1.msra.mxu0 0.0
    %457 = vmatprep.subr.mxu0 0.0
    %458 = vmatpush1.msra.mxu0 0.0
    %459 = vmatprep.subr.mxu0 0.0
    %460 = vmatpush1.msra.mxu0 0.0
    %461 = vmatprep.subr.mxu0 0.0
    %462 = vmatpush1.msra.mxu0 0.0
    %463 = vmatprep.subr.mxu0 0.0
    %464 = vmatpush1.msra.mxu0 0.0
    %465 = vmatprep.subr.mxu0 0.0
    %466 = vmatpush1.msra.mxu0 0.0
    %467 = vmatprep.subr.mxu0 0.0
    %468 = vmatpush1.msra.mxu0 0.0
    %469 = vmatprep.subr.mxu0 0.0
    %470 = vmatpush1.msra.mxu0 0.0
    %471 = vmatprep.subr.mxu0 0.0
    %472 = vmatpush1.msra.mxu0 0.0
    %473 = vmatprep.subr.mxu0 0.0
    %474 = vmatpush1.msra.mxu0 0.0
    %475 = vmatprep.subr.mxu0 0.0
    %476 = vmatpush1.msra.mxu0 0.0
    %477 = vmatprep.subr.mxu0 0.0
    %478 = vmatpush1.msra.mxu0 0.0
    %479 = vmatprep.subr.mxu0 0.0
    %480 = vmatpush1.msra.mxu0 0.0
    %481 = vmatprep.subr.mxu0 0.0
    %482 = vmatpush1.msra.mxu0 0.0
    %483 = vmatprep.subr.mxu0 0.0
    %484 = vmatpush1.msra.mxu0 0.0
    %485 = vmatprep.subr.mxu0 0.0
    %486 = vmatpush1.msra.mxu0 0.0
    %487 = vmatprep.subr.mxu0 0.0
    %488 = vmatpush1.msra.mxu0 0.0
    %489 = vmatprep.subr.mxu0 0.0
    %490 = vmatpush1.msra.mxu0 0.0
    %491 = vmatprep.subr.mxu0 0.0
    %492 = vmatpush1.msra.mxu0 0.0
    %493 = vmatprep.subr.mxu0 0.0
    %494 = vmatpush1.msra.mxu0 0.0
    %495 = vmatprep.subr.mxu0 0.0
    %496 = vmatpush1.msra.mxu0 0.0
    %497 = vmatprep.subr.mxu0 0.0
    %498 = vmatpush1.msra.mxu0 0.0
    %499 = vmatprep.mubr.f32.mxu0 0.0
    %500 = vmatmul.mubr.f32.gmra.mrb[0].mxu0 %v430
    %v501 = vpop.f32.mrb[0].mxu0
    %v502 = vadd.f32 %v427, %v501
    %v503 = vpop.f32.mrb[0].mxu0
    %504 = vdwg.mxu0
    %v505 = vmax.f32 %v502, 0.0
    %v506 = vld [vmem:[%s9] sm:$0xf]
    %v507 = vld [vmem:[%s10] sm:$0xf]
    %509 = vset.pattern.permute.xlu0 0
    %510 = vperm.xlu0 %509, %v507
    %v511 = vpop.permute.xlu0 %510
    %vm513 = vcmask 39936
    %v515 = vsel %vm513, %v506, 0
    %vm517 = vcmask 1044480
    %v519 = vsel %vm517, %v505, 0
    %521 = vmatprep.subr.mxu0 0.0
    %522 = vmatpush1.msra.mxu0 %v519
    %523 = vmatprep.subr.mxu0 0.0
    %524 = vmatpush1.msra.mxu0 0.0
    %525 = vmatprep.subr.mxu0 0.0
    %526 = vmatpush1.msra.mxu0 0.0
    %527 = vmatprep.subr.mxu0 0.0
    %528 = vmatpush1.msra.mxu0 0.0
    %529 = vmatprep.subr.mxu0 0.0
    %530 = vmatpush1.msra.mxu0 0.0
    %531 = vmatprep.subr.mxu0 0.0
    %532 = vmatpush1.msra.mxu0 0.0
    %533 = vmatprep.subr.mxu0 0.0
    %534 = vmatpush1.msra.mxu0 0.0
    %535 = vmatprep.subr.mxu0 0.0
    %536 = vmatpush1.msra.mxu0 0.0
    %537 = vmatprep.subr.mxu0 0.0
    %538 = vmatpush1.msra.mxu0 0.0
    %539 = vmatprep.subr.mxu0 0.0
    %540 = vmatpush1.msra.mxu0 0.0
    %541 = vmatprep.subr.mxu0 0.0
    %542 = vmatpush1.msra.mxu0 0.0
    %543 = vmatprep.subr.mxu0 0.0
    %544 = vmatpush1.msra.mxu0 0.0
    %545 = vmatprep.subr.mxu0 0.0
    %546 = vmatpush1.msra.mxu0 0.0
    %547 = vmatprep.subr.mxu0 0.0
    %548 = vmatpush1.msra.mxu0 0.0
    %549 = vmatprep.subr.mxu0 0.0
    %550 = vmatpush1.msra.mxu0 0.0
    %551 = vmatprep.subr.mxu0 0.0
    %552 = vmatpush1.msra.mxu0 0.0
    %553 = vmatprep.subr.mxu0 0.0
    %554 = vmatpush1.msra.mxu0 0.0
    %555 = vmatprep.subr.mxu0 0.0
    %556 = vmatpush1.msra.mxu0 0.0
    %557 = vmatprep.subr.mxu0 0.0
    %558 = vmatpush1.msra.mxu0 0.0
    %559 = vmatprep.subr.mxu0 0.0
    %560 = vmatpush1.msra.mxu0 0.0
    %561 = vmatprep.subr.mxu0 0.0
    %562 = vmatpush1.msra.mxu0 0.0
    %563 = vmatprep.subr.mxu0 0.0
    %564 = vmatpush1.msra.mxu0 0.0
    %565 = vmatprep.subr.mxu0 0.0
    %566 = vmatpush1.msra.mxu0 0.0
    %567 = vmatprep.subr.mxu0 0.0
    %568 = vmatpush1.msra.mxu0 0.0
    %569 = vmatprep.subr.mxu0 0.0
    %570 = vmatpush1.msra.mxu0 0.0
    %571 = vmatprep.subr.mxu0 0.0
    %572 = vmatpush1.msra.mxu0 0.0
    %573 = vmatprep.subr.mxu0 0.0
    %574 = vmatpush1.msra.mxu0 0.0
    %575 = vmatprep.subr.mxu0 0.0
    %576 = vmatpush1.msra.mxu0 0.0
    %577 = vmatprep.subr.mxu0 0.0
    %578 = vmatpush1.msra.mxu0 0.0
    %579 = vmatprep.subr.mxu0 0.0
    %580 = vmatpush1.msra.mxu0 0.0
    %581 = vmatprep.subr.mxu0 0.0
    %582 = vmatpush1.msra.mxu0 0.0
    %583 = vmatprep.subr.mxu0 0.0
    %584 = vmatpush1.msra.mxu0 0.0
    %585 = vmatprep.mubr.f32.mxu0 0.0
    %586 = vmatmul.mubr.f32.gmra.mrb[0].mxu0 %v515
    %v587 = vpop.f32.mrb[0].mxu0
    %v588 = vadd.f32 %v511, %v587
    %v589 = vpop.f32.mrb[0].mxu0
    %590 = vdwg.mxu0
    %vm591 = vcmask 1043456
    %v592 = vsel %vm591, %v588, -inf
    %v593 = vrot.slane %v592, 4
    %v594 = vmax.f32 %v592, %v593
    %v595 = vrot.slane %v594, 2
    %v596 = vmax.f32 %v594, %v595
    %v597 = vrot.slane %v596, 1
    %v598 = vmax.f32 %v596, %v597
    %v599 = vsub.f32 %v588, %v598
    %v600 = vmul.f32 %v599, 1.442695
    %v601 = vpow.pop %v600
    %v602 = vsel %vm591, %v601, 0.0
    %v603 = vrot.slane %v602, 4
    %v604 = vadd.f32 %v602, %v603
    %v605 = vrot.slane %v604, 2
    %v606 = vadd.f32 %v604, %v605
    %v607 = vrot.slane %v606, 1
    %v608 = vadd.f32 %v606, %v607
    %v609 = vrcp.pop %v608
    %v610 = vmul.f32 %v601, %v609
    %611 = vst [vmem:[#allocation2] sm:$0xf] %v610
    // Predicated region
    $region46: #{tpu_custom_call.1} parent=1 // pred_check
      _
    $region47: #{tpu_custom_call.1} parent=1 // pred_check_branch
      %613 = sbr.rel (0) target = $region49
    $region48: #{tpu_custom_call.1} parent=1 // pred_region
      %s615 = ssub.s32 64, 64
      %616 = vsyncadd [#allocation3], %s615
      %s618 = sshll.u32 [#allocation2], 4
      %s619 = int_to_ptr.vmem [resolvable:$true] %s618
      %621 = dma.vmem_to_hbm [thread:$0]  %s619, 64, %s11, [#allocation3]
    $region49: #{tpu_custom_call.1} parent=1 // pred_fallthru
      _
    // Predicated region
    $region50: #{tpu_custom_call.1} parent=1 // pred_check
      _
    $region51: #{tpu_custom_call.1} parent=1 // pred_check_branch
      %623 = sbr.rel (0) target = $region53
    $region52: #{tpu_custom_call.1} parent=1 // pred_region
      %624 = dma.done [#allocation3], 64
    $region53: #{tpu_custom_call.1} parent=1 // pred_fallthru
      _
    %625 = vsyncpa [#allocation3], 1

</llo_original>
